<compile_context>
chip_gen: v7x
topology: tpu7x:2x2x1
jax: 0.10.0
libtpu: 0.0.40
codegen_flags: <defaults>
</compile_context>

<pallas_src>
import jax
import jax.numpy as jnp
from jax.experimental import pallas as pl
from jax.experimental.pallas import tpu as pltpu


# ---------------------------------------------------------------------------
# Kernels
# ---------------------------------------------------------------------------
def _fused_kernel(x_ref, w_ref, o_ref):
    """Resident-weight path: out = l2_normalize(x @ w) in one shot.

    w_ref holds the entire fc matrix (DMA'd once, constant block index), so no
    accumulator scratch or predicated init/finalize regions are needed.
    """
    acc = jnp.dot(x_ref[...], w_ref[...], preferred_element_type=jnp.float32)
    # output / output.norm(dim=-1, keepdim=True)  (zero rows -> NaN, as in PyTorch)
    inv_norm = jax.lax.rsqrt(jnp.sum(acc * acc, axis=-1, keepdims=True))
    o_ref[...] = (acc * inv_norm).astype(o_ref.dtype)


def _ktiled_kernel(x_ref, w_ref, o_ref, acc_ref):
    """Fallback for weights too large for VMEM: K-tiled accumulation.

    Grid: (M // tm, K // tk) with K (reduction) as the last, "arbitrary" axis.
    Normalization happens once the full row is accumulated.
    """
    k = pl.program_id(1)

    @pl.when(k == 0)
    def _():
        acc_ref[...] = jnp.zeros_like(acc_ref)

    acc_ref[...] += jnp.dot(
        x_ref[...], w_ref[...], preferred_element_type=jnp.float32
    )

    @pl.when(k == pl.num_programs(1) - 1)
    def _():
        acc = acc_ref[...]
        inv_norm = jax.lax.rsqrt(jnp.sum(acc * acc, axis=-1, keepdims=True))
        o_ref[...] = (acc * inv_norm).astype(o_ref.dtype)


# ---------------------------------------------------------------------------
# Wrapper
# ---------------------------------------------------------------------------
# Conservative VMEM budget for the resident-weight plan (fits v7x's 64 MiB
# physical / 32 MiB default scoped VMEM with headroom for double-buffering).
_RESIDENT_VMEM_BUDGET = 24 * 1024 * 1024


def target_forward(x, fc, *, tm=None, tk=512):
    """output = l2_normalize(x @ fc.astype(x.dtype), axis=-1)."""
    fc = fc.astype(x.dtype)  # mirrors self.fc.to(x.dtype)
    K2, N = fc.shape
    orig_lead = x.shape[:-1]
    K = x.shape[-1]
    assert K == K2, "feature dims must match"

    x2 = x.reshape(-1, K)
    M = x2.shape[0]
    itemsize = jnp.dtype(x.dtype).itemsize
    row_align = 16 if itemsize == 2 else 8  # bf16 packs 2 rows / sublane

    # Tile rows: single step for small M, 256-row tiles otherwise (MXU-wide).
    if tm is None:
        tm = M if M <= 256 else 256
    tm = max(row_align, ((tm + row_align - 1) // row_align) * row_align)
    m_pad = pl.cdiv(M, tm) * tm
    if m_pad != M:
        x2 = jnp.pad(x2, ((0, m_pad - M), (0, 0)))

    # VMEM plan for the resident-weight path:
    #   fc (single-buffered, constant index) + 2x x-tile + 2x out-tile + f32 acc.
    resident_bytes = (
        K * N * itemsize
        + 2 * tm * K * itemsize
        + 2 * tm * N * itemsize
        + tm * N * 4
    )

    if resident_bytes <= _RESIDENT_VMEM_BUDGET:
        # ------------------ resident-weight path (no K grid axis) ------------
        out = pl.pallas_call(
            _fused_kernel,
            out_shape=jax.ShapeDtypeStruct((m_pad, N), x.dtype),
            grid_spec=pltpu.PrefetchScalarGridSpec(
                num_scalar_prefetch=0,
                grid=(m_pad // tm,),
                in_specs=[
                    pl.BlockSpec((tm, K), lambda i: (i, 0)),   # x row-tile
                    pl.BlockSpec((K, N), lambda i: (0, 0)),    # fc resident
                ],
                out_specs=pl.BlockSpec((tm, N), lambda i: (i, 0)),
            ),
            compiler_params=pltpu.CompilerParams(
                dimension_semantics=("parallel",),
            ),
        )(x2, fc)
    else:
        # ------------------ K-tiled fallback (huge fc) ------------------------
        tk = max(128, (tk // 128) * 128)
        k_pad = pl.cdiv(K, tk) * tk
        if k_pad != K:
            # Zero padding on the contraction dim does not change the result.
            x2 = jnp.pad(x2, ((0, 0), (0, k_pad - K)))
            fc = jnp.pad(fc, ((0, k_pad - K), (0, 0)))
        out = pl.pallas_call(
            _ktiled_kernel,
            out_shape=jax.ShapeDtypeStruct((m_pad, N), x.dtype),
            grid_spec=pltpu.PrefetchScalarGridSpec(
                num_scalar_prefetch=0,
                grid=(m_pad // tm, k_pad // tk),
                in_specs=[
                    pl.BlockSpec((tm, tk), lambda i, k: (i, k)),
                    pl.BlockSpec((tk, N), lambda i, k: (k, 0)),
                ],
                out_specs=pl.BlockSpec((tm, N), lambda i, k: (i, 0)),
                scratch_shapes=[pltpu.VMEM((tm, N), jnp.float32)],
            ),
            compiler_params=pltpu.CompilerParams(
                dimension_semantics=("parallel", "arbitrary"),
                vmem_limit_bytes=64 * 1024 * 1024,
            ),
        )(x2, fc)

    if m_pad != M:
        out = out[:M]
    return out.reshape(orig_lead + (N,))


def target_reference(x, fc):
    out = x @ fc.astype(x.dtype)
    return out / jnp.linalg.norm(out, axis=-1, keepdims=True)


# ---------------------------------------------------------------------------
if __name__ == "__main__":
    key = jax.random.PRNGKey(0)
    kx, kw, kx2 = jax.random.split(key, 3)

    # Small shapes consistent with the module: 16 token/batch rows,
    # 256-d input features, 128-d projected output features.
    M, K, N = 16, 256, 128
    x = jax.random.normal(kx, (M, K), dtype=jnp.float32)
    fc = jax.random.normal(kw, (K, N), dtype=jnp.float32) * 0.02

    out = jax.block_until_ready(target_forward(x, fc))
    ref = target_reference(x, fc)
    assert out.shape == (M, N)
    assert jnp.allclose(out, ref, atol=1e-5, rtol=1e-5), "mismatch vs reference"
    assert jnp.allclose(
        jnp.linalg.norm(out, axis=-1), jnp.ones((M,)), atol=1e-5
    )

    # Second check: multi-block M path with row padding (grid > 1, parallel axis).
    M2 = 384
    x_big = jax.random.normal(kx2, (M2, K), dtype=jnp.float32)
    out_big = jax.block_until_ready(target_forward(x_big, fc))
    ref_big = target_reference(x_big, fc)
    assert out_big.shape == (M2, N)
    assert jnp.allclose(out_big, ref_big, atol=1e-5, rtol=1e-5), "mismatch (big M)"

    print("KERNEL_OK")
</pallas_src>

<mosaic_0001>
module attributes {stable_mosaic.version = 11 : i64} {
  func.func @_fused_kernel(%arg0: i32, %arg1: memref<16x256xf32, #tpu.memory_space<vmem>>, %arg2: memref<256x128xf32, #tpu.memory_space<vmem>>, %arg3: memref<16x128xf32, #tpu.memory_space<vmem>>) attributes {dimension_semantics = [#tpu.dimension_semantics<parallel>], iteration_bounds = array<i64: 1>, scalar_prefetch = 0 : i64, scratch_operands = 0 : i64, tpu.core_type = #tpu.core_type<tc>, window_params = [{transform_indices = @transform_0, window_bounds = array<i64: 16, 256>}, {pipeline_mode = #tpu.pipeline_mode<synchronous>, transform_indices = @transform_1, window_bounds = array<i64: 256, 128>}, {transform_indices = @transform_2, window_bounds = array<i64: 16, 128>}]} {
    %c0 = arith.constant 0 : index
    %c0_0 = arith.constant 0 : index
    %0 = vector.load %arg1[%c0, %c0_0] : memref<16x256xf32, #tpu.memory_space<vmem>>, vector<16x256xf32>
    %c0_1 = arith.constant 0 : index
    %c0_2 = arith.constant 0 : index
    %1 = vector.load %arg2[%c0_1, %c0_2] : memref<256x128xf32, #tpu.memory_space<vmem>>, vector<256x128xf32>
    %cst = arith.constant dense<0.000000e+00> : vector<16x128xf32>
    %2 = tpu.matmul %0, %1, %cst {dimension_numbers = #tpu.dot_dimension_numbers<[1], [0], [0], [1], [0, 0, 1, 1], [], []>} : vector<16x256xf32>, vector<256x128xf32>, vector<16x128xf32> -> vector<16x128xf32>
    %3 = arith.mulf %2, %2 : vector<16x128xf32>
    %cst_3 = arith.constant dense<0.000000e+00> : vector<16xf32>
    %4 = vector.multi_reduction <add>, %3, %cst_3 [1] : vector<16x128xf32> to vector<16xf32>
    %5 = vector.shape_cast %4 : vector<16xf32> to vector<16x1xf32>
    %6 = math.rsqrt %5 : vector<16x1xf32>
    %7 = vector.broadcast %6 : vector<16x1xf32> to vector<16x128xf32>
    %8 = arith.mulf %2, %7 : vector<16x128xf32>
    %c0_4 = arith.constant 0 : index
    %c0_5 = arith.constant 0 : index
    %9 = vector.load %arg3[%c0_4, %c0_5] : memref<16x128xf32, #tpu.memory_space<vmem>>, vector<16x128xf32>
    tpu.vector_store %arg3[%c0_4, %c0_5], %8 {strides = array<i32>} : memref<16x128xf32, #tpu.memory_space<vmem>>, vector<16x128xf32>,
    return
  }
  func.func @transform_0(%arg0: i32) -> (i32, i32) {
    %c0_i32 = arith.constant 0 : i32
    %c0_i32_0 = arith.constant 0 : i32
    return %arg0, %c0_i32 : i32, i32
  }
  func.func @transform_1(%arg0: i32) -> (i32, i32) {
    %c0_i32 = arith.constant 0 : i32
    %c0_i32_0 = arith.constant 0 : i32
    %c0_i32_1 = arith.constant 0 : i32
    return %c0_i32, %c0_i32_0 : i32, i32
  }
  func.func @transform_2(%arg0: i32) -> (i32, i32) {
    %c0_i32 = arith.constant 0 : i32
    %c0_i32_0 = arith.constant 0 : i32
    return %arg0, %c0_i32 : i32, i32
  }
}

</mosaic_0001>

<llo_original>
// kernel: tpu_custom_call.1
$region0: #{tpu_custom_call.1}
  #allocation0 [shape = 'u32[]', space=smem, size = 0x4, offset = 0x4, fixed_abs, tag = 'smem constant byte address 0x4 - core index']
  #allocation1 [shape = 'u32[144,128]{1,0:T(1,128)}', space=vmem, size = 0x12000, scoped, tag = 'internal scratch']
  %s0 = inlined_call_operand.hbm [shape: f32[16,256], index: 0, kind: input, shape index: {}]
  %s1 = inlined_call_operand.hbm [shape: f32[256,128], index: 1, kind: input, shape index: {}]
  %s2 = inlined_call_operand.hbm [shape: f32[16,128], index: 2, kind: output, shape index: {}]
  %s3 = sld [smem:[#allocation0]]
  $region26: #{tpu_custom_call.1} parent=0
    _
  %s5 = ssub.s32 1, %s3
  %s6 = scalar_select 0, %s5, %s3
  $region1: #{tpu_custom_call.1} parent=0
    #allocation2 [shape = 'u8[16384]{0}', space=vmem, size = 0x4000, scoped, tag = 'input window, operand 0, single buffered']
    #allocation3 [shape = 's32[1]{0}', space=sflag, size = 0x4, scoped, tag = 'scoped memory for tpu_custom_call.1']
    #allocation4 [shape = 's32[1]{0}', space=sflag, size = 0x4, scoped, tag = 'scoped memory for tpu_custom_call.1']
    #allocation5 [shape = 'u8[131072]{0}', space=vmem, size = 0x20000, scoped, tag = 'input window, operand 1, single buffered']
    #allocation6 [shape = 's32[1]{0}', space=sflag, size = 0x4, scoped, tag = 'scoped memory for tpu_custom_call.1']
    #allocation7 [shape = 'u8[8192]{0}', space=vmem, size = 0x2000, scoped, tag = 'output window, operand 0, single buffered']
    %7 = vsyncpa [#allocation3], 0
    %8 = vsyncpa [#allocation6], 0
    %9 = vsyncpa [#allocation4], 0
    // Predicated region
    $region2: #{tpu_custom_call.1} parent=1 // pred_check
      _
    $region3: #{tpu_custom_call.1} parent=1 // pred_check_branch
      %11 = sbr.rel (0) target = $region5
    $region4: #{tpu_custom_call.1} parent=1 // pred_region
      %s13 = ssub.s32 512, 512
      %14 = vsyncadd [#allocation3], %s13
      %s15 = sshll.u32 [#allocation2], 4
      %s16 = int_to_ptr.vmem [resolvable:$true] %s15
      %21 = dma.hbm_to_vmem [thread:$0]  %s0, 512, %s16, [#allocation3], 256, 256, 16
    $region5: #{tpu_custom_call.1} parent=1 // pred_fallthru
      _
    // Predicated region
    $region6: #{tpu_custom_call.1} parent=1 // pred_check
      _
    $region7: #{tpu_custom_call.1} parent=1 // pred_check_branch
      %23 = sbr.rel (0) target = $region9
    $region8: #{tpu_custom_call.1} parent=1 // pred_region
      %s25 = ssub.s32 4096, 4096
      %26 = vsyncadd [#allocation6], %s25
      %s27 = sshll.u32 [#allocation5], 4
      %s28 = int_to_ptr.vmem [resolvable:$true] %s27
      %33 = dma.hbm_to_vmem [thread:$0]  %s1, 4096, %s28, [#allocation6], 128, 128, 8
    $region9: #{tpu_custom_call.1} parent=1 // pred_fallthru
      _
    // Predicated region
    $region10: #{tpu_custom_call.1} parent=1 // pred_check
      _
    $region11: #{tpu_custom_call.1} parent=1 // pred_check_branch
      %35 = sbr.rel (0) target = $region13
    $region12: #{tpu_custom_call.1} parent=1 // pred_region
      %36 = dma.done [#allocation3], 512
    $region13: #{tpu_custom_call.1} parent=1 // pred_fallthru
      _
    // Predicated region
    $region14: #{tpu_custom_call.1} parent=1 // pred_check
      _
    $region15: #{tpu_custom_call.1} parent=1 // pred_check_branch
      %38 = sbr.rel (0) target = $region17
    $region16: #{tpu_custom_call.1} parent=1 // pred_region
      %39 = dma.done [#allocation6], 4096
    $region17: #{tpu_custom_call.1} parent=1 // pred_fallthru
      _
    %v40 = vld [vmem:[#allocation2] sm:$0xff]
    %v41 = vld [vmem:[#allocation2 + $0x8] sm:$0xff]
    %v42 = vld [vmem:[#allocation2 + $0x10] sm:$0xff]
    %v43 = vld [vmem:[#allocation2 + $0x18] sm:$0xff]
    %v44 = vld [vmem:[#allocation5] sm:$0xff]
    %v45 = vld [vmem:[#allocation5 + $0x8] sm:$0xff]
    %v46 = vld [vmem:[#allocation5 + $0x10] sm:$0xff]
    %v47 = vld [vmem:[#allocation5 + $0x18] sm:$0xff]
    %v48 = vld [vmem:[#allocation5 + $0x20] sm:$0xff]
    %v49 = vld [vmem:[#allocation5 + $0x28] sm:$0xff]
    %v50 = vld [vmem:[#allocation5 + $0x30] sm:$0xff]
    %v51 = vld [vmem:[#allocation5 + $0x38] sm:$0xff]
    %v52 = vld [vmem:[#allocation5 + $0x40] sm:$0xff]
    %v53 = vld [vmem:[#allocation5 + $0x48] sm:$0xff]
    %v54 = vld [vmem:[#allocation5 + $0x50] sm:$0xff]
    %v55 = vld [vmem:[#allocation5 + $0x58] sm:$0xff]
    %v56 = vld [vmem:[#allocation5 + $0x60] sm:$0xff]
    %v57 = vld [vmem:[#allocation5 + $0x68] sm:$0xff]
    %v58 = vld [vmem:[#allocation5 + $0x70] sm:$0xff]
    %v59 = vld [vmem:[#allocation5 + $0x78] sm:$0xff]
    %v60 = vld [vmem:[#allocation5 + $0x80] sm:$0xff]
    %v61 = vld [vmem:[#allocation5 + $0x88] sm:$0xff]
    %v62 = vld [vmem:[#allocation5 + $0x90] sm:$0xff]
    %v63 = vld [vmem:[#allocation5 + $0x98] sm:$0xff]
    %v64 = vld [vmem:[#allocation5 + $0xa0] sm:$0xff]
    %v65 = vld [vmem:[#allocation5 + $0xa8] sm:$0xff]
    %v66 = vld [vmem:[#allocation5 + $0xb0] sm:$0xff]
    %v67 = vld [vmem:[#allocation5 + $0xb8] sm:$0xff]
    %v68 = vld [vmem:[#allocation5 + $0xc0] sm:$0xff]
    %v69 = vld [vmem:[#allocation5 + $0xc8] sm:$0xff]
    %v70 = vld [vmem:[#allocation5 + $0xd0] sm:$0xff]
    %v71 = vld [vmem:[#allocation5 + $0xd8] sm:$0xff]
    %v72 = vld [vmem:[#allocation5 + $0xe0] sm:$0xff]
    %v73 = vld [vmem:[#allocation5 + $0xe8] sm:$0xff]
    %v74 = vld [vmem:[#allocation5 + $0xf0] sm:$0xff]
    %v75 = vld [vmem:[#allocation5 + $0xf8] sm:$0xff]
    %76 = vmatprep.subr.mxu0 0.0
    %77 = vmatpush1.msra.mxu0 %v44
    %78 = vmatprep.subr.mxu0 0.0
    %79 = vmatpush1.msra.mxu0 %v45
    %80 = vmatprep.subr.mxu0 0.0
    %81 = vmatpush1.msra.mxu0 %v46
    %82 = vmatprep.subr.mxu0 0.0
    %83 = vmatpush1.msra.mxu0 %v47
    %84 = vmatprep.subr.mxu0 0.0
    %85 = vmatpush1.msra.mxu0 %v48
    %86 = vmatprep.subr.mxu0 0.0
    %87 = vmatpush1.msra.mxu0 %v49
    %88 = vmatprep.subr.mxu0 0.0
    %89 = vmatpush1.msra.mxu0 %v50
    %90 = vmatprep.subr.mxu0 0.0
    %91 = vmatpush1.msra.mxu0 %v51
    %92 = vmatprep.subr.mxu0 0.0
    %93 = vmatpush1.msra.mxu0 %v52
    %94 = vmatprep.subr.mxu0 0.0
    %95 = vmatpush1.msra.mxu0 %v53
    %96 = vmatprep.subr.mxu0 0.0
    %97 = vmatpush1.msra.mxu0 %v54
    %98 = vmatprep.subr.mxu0 0.0
    %99 = vmatpush1.msra.mxu0 %v55
    %100 = vmatprep.subr.mxu0 0.0
    %101 = vmatpush1.msra.mxu0 %v56
    %102 = vmatprep.subr.mxu0 0.0
    %103 = vmatpush1.msra.mxu0 %v57
    %104 = vmatprep.subr.mxu0 0.0
    %105 = vmatpush1.msra.mxu0 %v58
    %106 = vmatprep.subr.mxu0 0.0
    %107 = vmatpush1.msra.mxu0 %v59
    %108 = vmatprep.subr.mxu0 0.0
    %109 = vmatpush1.msra.mxu0 %v60
    %110 = vmatprep.subr.mxu0 0.0
    %111 = vmatpush1.msra.mxu0 %v61
    %112 = vmatprep.subr.mxu0 0.0
    %113 = vmatpush1.msra.mxu0 %v62
    %114 = vmatprep.subr.mxu0 0.0
    %115 = vmatpush1.msra.mxu0 %v63
    %116 = vmatprep.subr.mxu0 0.0
    %117 = vmatpush1.msra.mxu0 %v64
    %118 = vmatprep.subr.mxu0 0.0
    %119 = vmatpush1.msra.mxu0 %v65
    %120 = vmatprep.subr.mxu0 0.0
    %121 = vmatpush1.msra.mxu0 %v66
    %122 = vmatprep.subr.mxu0 0.0
    %123 = vmatpush1.msra.mxu0 %v67
    %124 = vmatprep.subr.mxu0 0.0
    %125 = vmatpush1.msra.mxu0 %v68
    %126 = vmatprep.subr.mxu0 0.0
    %127 = vmatpush1.msra.mxu0 %v69
    %128 = vmatprep.subr.mxu0 0.0
    %129 = vmatpush1.msra.mxu0 %v70
    %130 = vmatprep.subr.mxu0 0.0
    %131 = vmatpush1.msra.mxu0 %v71
    %132 = vmatprep.subr.mxu0 0.0
    %133 = vmatpush1.msra.mxu0 %v72
    %134 = vmatprep.subr.mxu0 0.0
    %135 = vmatpush1.msra.mxu0 %v73
    %136 = vmatprep.subr.mxu0 0.0
    %137 = vmatpush1.msra.mxu0 %v74
    %138 = vmatprep.subr.mxu0 0.0
    %139 = vmatpush1.msra.mxu0 %v75
    %140 = vmatprep.mubr.f32.mxu0 %v41
    %141 = vmatmul.mubr.f32.gmra.mrb[0].mxu0 %v40
    %v142 = vpop.f32.mrb[0].mxu0
    %v143 = vadd.f32 0.0, %v142
    %v144 = vpop.f32.mrb[0].mxu0
    %145 = vmatprep.mubr.f32.mxu0 %v43
    %146 = vmatmul.mubr.f32.gmra.mrb[0].mxu0 %v42
    %v147 = vpop.f32.mrb[0].mxu0
    %v148 = vadd.f32 0.0, %v147
    %v149 = vpop.f32.mrb[0].mxu0
    %150 = vdwg.mxu0
    %v151 = vmul.f32 %v143, %v143
    %v152 = vmul.f32 %v148, %v148
    %153 = vadd.xlane.f32.xlu0 %v151
    %v154 = vpop.xlane.xlu0 %153
    %155 = vadd.xlane.f32.xlu0 %v152
    %v156 = vpop.xlane.xlu0 %155
    %v157 = vrsqrt.pop %v154
    %v158 = vrsqrt.pop %v156
    %v159 = vmul.f32 %v143, %v157
    %v160 = vmul.f32 %v148, %v158
    %161 = vst [vmem:[#allocation7] sm:$0xff] %v159
    %162 = vst [vmem:[#allocation7 + $0x8] sm:$0xff] %v160
    // Predicated region
    $region18: #{tpu_custom_call.1} parent=1 // pred_check
      _
    $region19: #{tpu_custom_call.1} parent=1 // pred_check_branch
      %164 = sbr.rel (0) target = $region21
    $region20: #{tpu_custom_call.1} parent=1 // pred_region
      %s166 = ssub.s32 256, 256
      %167 = vsyncadd [#allocation4], %s166
      %s168 = sshll.u32 [#allocation7], 4
      %s169 = int_to_ptr.vmem [resolvable:$true] %s168
      %174 = dma.vmem_to_hbm [thread:$0]  %s169, 256, %s2, [#allocation4], 128, 128, 8
    $region21: #{tpu_custom_call.1} parent=1 // pred_fallthru
      _
    // Predicated region
    $region22: #{tpu_custom_call.1} parent=1 // pred_check
      _
    $region23: #{tpu_custom_call.1} parent=1 // pred_check_branch
      %176 = sbr.rel (0) target = $region25
    $region24: #{tpu_custom_call.1} parent=1 // pred_region
      %177 = dma.done [#allocation4], 256
    $region25: #{tpu_custom_call.1} parent=1 // pred_fallthru
      _
    %178 = vsyncpa [#allocation3], 1
    %179 = vsyncpa [#allocation6], 1
    %180 = vsyncpa [#allocation4], 1

</llo_original>
